<compile_context>
chip_gen: v7x
topology: tpu7x:2x2x1
jax: 0.10.0
libtpu: 0.0.40
codegen_flags: <defaults>
</compile_context>

<pallas_src>
import functools

import jax
import jax.numpy as jnp
from jax import lax
from jax.experimental import pallas as pl
from jax.experimental.pallas import tpu as pltpu


def _round_up(x, m):
    return ((x + m - 1) // m) * m


def _pick_tiling(n, k, d, tile_n_cap):
    """Pick the N-tile size TN, padded length and grid size.

    TN is bounded by a VMEM budget for the live (TN, K) f32 temporaries plus
    the double-buffered zf / noise input tiles and the zq output tile, and is
    capped so the 1-D grid has at least 2 steps (v7x megacore).
    """
    budget = 32 * 1024 * 1024                      # headroom under 48 MiB limit
    per_row = 8 * k * 4 + 2 * k * 2 + 2 * d * 2 + 2 * d * 4
    tn = max(8, (budget // per_row) // 8 * 8)
    tn = min(tn, int(tile_n_cap), _round_up(n, 8))
    if n > 8:                                      # >= 2 tiles -> both v7x TCs
        tn = min(tn, _round_up((n + 1) // 2, 8))
    tn = max(8, tn)
    n_pad = _round_up(n, tn)
    return tn, n_pad, n_pad // tn


def _vq_kernel(zf_ref, cb_ref, csq_ref, g_ref, zq_ref, counts_ref, *,
               epsilon, n_total, tile_n, needs_mask):
    zf = zf_ref[...]                               # (TN, D) bf16
    cb = cb_ref[...]                               # (K,  D) bf16 (resident)
    c_sq = csq_ref[...]                            # (1,  K) f32  (resident)

    TN, _D = zf.shape
    K = cb.shape[0]

    # ---- score = -(cost - ||z||^2) = 2 z.c - ||c||^2  (MXU, f32 acc) -------
    cross = lax.dot_general(zf, cb, (((1,), (1,)), ((), ())),
                            preferred_element_type=jnp.float32)   # (TN, K)
    score = 2.0 * cross - c_sq                                    # (TN, K) f32

    # ---- hard assignment (first-occurrence == torch.argmin) -> counts ------
    iota_k = lax.broadcasted_iota(jnp.int32, (TN, K), 1)
    max_val = jnp.max(score, axis=1, keepdims=True)
    idx = jnp.min(jnp.where(score == max_val, iota_k, K),
                  axis=1, keepdims=True)                          # (TN, 1)
    onehot = jnp.where(iota_k == idx, 1.0, 0.0)                   # (TN, K) f32

    def _store_counts(oh):
        # Partial reduction to 8 sublanes only (VPU adds, no XLU reduce);
        # the wrapper finishes the sum over tiles and sublanes.
        counts_ref[...] = jnp.sum(oh.reshape(TN // 8, 8, K), axis=0)[None]

    if needs_mask:
        tile = pl.program_id(0)
        last = pl.num_programs(0) - 1

        @pl.when(tile == last)
        def _():
            row = tile * tile_n + lax.broadcasted_iota(jnp.int32, (TN, 1), 0)
            _store_counts(jnp.where(row < n_total, onehot, 0.0))

        @pl.when(tile != last)
        def _():
            _store_counts(onehot)
    else:
        _store_counts(onehot)

    # ---- gumbel-softmax sample of the soft encodings ------------------------
    y = score + g_ref[...].astype(jnp.float32)                    # logits + g
    if epsilon != 1.0:
        y = y * (1.0 / epsilon)
    y = y - jnp.max(y, axis=1, keepdims=True)
    ey = jnp.exp(y)
    inv = 1.0 / jnp.sum(ey, axis=1, keepdims=True)                # (TN, 1)
    enc = ey * inv                                                # (TN, K)

    # ---- z_q = encodings @ codebook (straight-through value == z_q) --------
    zq = jnp.dot(enc.astype(jnp.bfloat16), cb,
                 preferred_element_type=jnp.float32)              # (TN, D)
    zq_ref[...] = zq.astype(zq_ref.dtype)


def duelform_ws_vq_forward(z, codebook, codebook_weight, flg_train, *,
                           epsilon=1.0, key=None, tile_n=2048):
    """Forward of DuelForm_WSVectorQuantizer._quantize (inference path).

    z: (B, C, H, W) f32 (NCHW, like the PyTorch module); codebook: (K, D), D == C.
    Returns (z_q (B, C, H, W), loss, perplexity).
    """
    if flg_train:
        # TODO(synk): training branch (kan_net1/kan_net2 + Adam inner loop,
        # compute_OT_loss, KLDivLoss) needs autograd + optimizer state and has
        # no clean single-forward Pallas equivalent.
        raise NotImplementedError("flg_train=True is not supported")

    B, C, H, W = z.shape
    K, D = codebook.shape
    assert D == C
    if key is None:
        key = jax.random.PRNGKey(0)

    # torch: z.permute(2, 3, 0, 1).reshape(-1, dim_dict)
    zf32 = jnp.transpose(z, (2, 3, 0, 1)).reshape(-1, C).astype(jnp.float32)
    N = zf32.shape[0]
    cb32 = codebook.astype(jnp.float32)
    c_sq = jnp.sum(cb32 * cb32, axis=1)[None, :]                  # (1, K) f32

    zf = zf32.astype(jnp.bfloat16)                                # MXU operand only
    cb = cb32.astype(jnp.bfloat16)

    TN, N_pad, num_tiles = _pick_tiling(N, K, D, tile_n)
    if N_pad != N:
        zf = jnp.pad(zf, ((0, N_pad - N), (0, 0)))

    # Gumbel noise, exactly torch's sample_gumbel formula (wrapper side so the
    # kernel stays free of hardware-only PRNG primitives).
    u = jax.random.uniform(key, (N_pad, K), dtype=jnp.float32)
    g = (-jnp.log(-jnp.log(u + 1e-10) + 1e-10)).astype(jnp.bfloat16)

    kernel = functools.partial(_vq_kernel, epsilon=float(epsilon), n_total=N,
                               tile_n=TN, needs_mask=(N % TN != 0))

    zq_flat, counts = pl.pallas_call(
        kernel,
        out_shape=(
            jax.ShapeDtypeStruct((N_pad, D), jnp.float32),
            jax.ShapeDtypeStruct((num_tiles, 8, K), jnp.float32),
        ),
        grid_spec=pltpu.PrefetchScalarGridSpec(
            num_scalar_prefetch=0,
            grid=(num_tiles,),
            in_specs=[
                pl.BlockSpec((TN, D), lambda i: (i, 0)),      # zf tile (bf16)
                pl.BlockSpec((K, D), lambda i: (0, 0)),       # codebook (resident)
                pl.BlockSpec((1, K), lambda i: (0, 0)),       # ||c||^2 (resident)
                pl.BlockSpec((TN, K), lambda i: (i, 0)),      # gumbel noise tile
            ],
            out_specs=(
                pl.BlockSpec((TN, D), lambda i: (i, 0)),      # z_q tile
                pl.BlockSpec((1, 8, K), lambda i: (i, 0, 0)),  # per-tile counts
            ),
        ),
        compiler_params=pltpu.CompilerParams(
            dimension_semantics=("parallel",),                # megacore on v7x
            vmem_limit_bytes=48 * 1024 * 1024,                # v7x-safe (64 MiB)
        ),
    )(zf, cb, c_sq, g)

    # straight-through:  z + (z_q - z).detach()  has forward value == z_q
    zq = jnp.transpose(zq_flat[:N].reshape(H, W, B, C), (2, 3, 0, 1))

    # Finalize perplexity in the wrapper (K floats, negligible).
    code_counts = jnp.sum(counts, axis=(0, 1))                    # (K,)
    e_mean = code_counts / jnp.float32(N)
    perplexity = jnp.exp(-jnp.sum(e_mean * jnp.log(e_mean + 1e-10)))

    loss = jnp.float32(0.0)                                       # eval path
    return zq, loss, perplexity


if __name__ == "__main__":
    root = jax.random.PRNGKey(0)
    kz, kc, kw, kn = jax.random.split(root, 4)

    # small shapes implied by the module: dim_dict = C, size_dict = K
    B, C, H, W = 2, 8, 8, 8          # N = H*W*B = 128
    K = 128                          # size_dict
    epsilon = 1.0                    # cfgs.quantization.epsilon (gumbel temp)

    z = jax.random.normal(kz, (B, C, H, W), dtype=jnp.float32)
    codebook = jax.random.normal(kc, (K, C), dtype=jnp.float32)
    codebook_weight = jax.random.normal(kw, (K,), dtype=jnp.float32)

    z_q, loss, perplexity = duelform_ws_vq_forward(
        z, codebook, codebook_weight, flg_train=False,
        epsilon=epsilon, key=kn)
    jax.block_until_ready((z_q, loss, perplexity))

    # ---- sanity checks -----------------------------------------------------
    zf = jnp.transpose(z, (2, 3, 0, 1)).reshape(-1, C)
    N = zf.shape[0]
    cross = jnp.dot(zf.astype(jnp.bfloat16), codebook.astype(jnp.bfloat16).T,
                    preferred_element_type=jnp.float32)
    z_sq = jnp.sum(zf ** 2, axis=1, keepdims=True)
    c_sq = jnp.sum(codebook ** 2, axis=1)[None, :]
    cost_ref = z_sq + c_sq - 2.0 * cross

    # perplexity (noise-independent) vs a reference mirroring the bf16 cost
    idx_ref = jnp.argmin(cost_ref, axis=1)
    e_mean_ref = jnp.mean(jax.nn.one_hot(idx_ref, K, dtype=jnp.float32), axis=0)
    perp_ref = jnp.exp(-jnp.sum(e_mean_ref * jnp.log(e_mean_ref + 1e-10)))

    # z_q vs a reference using the SAME wrapper-side gumbel noise
    TN, N_pad, _ = _pick_tiling(N, K, C, 2048)
    u = jax.random.uniform(kn, (N_pad, K), dtype=jnp.float32)[:N]
    g = (-jnp.log(-jnp.log(u + 1e-10) + 1e-10)).astype(jnp.bfloat16)
    y = (-cost_ref + g.astype(jnp.float32)) / epsilon
    enc_ref = jax.nn.softmax(y, axis=-1)
    zq_ref_flat = jnp.dot(enc_ref.astype(jnp.bfloat16),
                          codebook.astype(jnp.bfloat16),
                          preferred_element_type=jnp.float32)
    zq_ref = jnp.transpose(zq_ref_flat.reshape(H, W, B, C), (2, 3, 0, 1))

    assert z_q.shape == (B, C, H, W)
    assert bool(jnp.all(jnp.isfinite(z_q)))
    # z_q rows are (near-)convex combinations of codebook rows.
    lo = codebook.min(axis=0) - 0.1
    hi = codebook.max(axis=0) + 0.1
    zq_flat_chk = jnp.transpose(z_q, (2, 3, 0, 1)).reshape(-1, C)
    assert bool(jnp.all(zq_flat_chk >= lo[None, :]))
    assert bool(jnp.all(zq_flat_chk <= hi[None, :]))
    assert jnp.allclose(perplexity, perp_ref, atol=1e-2, rtol=2e-2)
    assert jnp.allclose(z_q, zq_ref, atol=3e-2), float(jnp.max(jnp.abs(z_q - zq_ref)))

    print("KERNEL_OK")
</pallas_src>

<mosaic_0001>
module attributes {stable_mosaic.version = 11 : i64} {
  func.func @_vq_kernel(%arg0: i32, %arg1: memref<64x8xbf16, #tpu.memory_space<vmem>>, %arg2: memref<128x8xbf16, #tpu.memory_space<vmem>>, %arg3: memref<1x128xf32, #tpu.memory_space<vmem>>, %arg4: memref<64x128xbf16, #tpu.memory_space<vmem>>, %arg5: memref<64x8xf32, #tpu.memory_space<vmem>>, %arg6: memref<1x8x128xf32, #tpu.memory_space<vmem>>) attributes {dimension_semantics = [#tpu.dimension_semantics<parallel>], iteration_bounds = array<i64: 2>, scalar_prefetch = 0 : i64, scratch_operands = 0 : i64, tpu.core_type = #tpu.core_type<tc>, window_params = [{transform_indices = @transform_0, window_bounds = array<i64: 64, 8>}, {pipeline_mode = #tpu.pipeline_mode<synchronous>, transform_indices = @transform_1, window_bounds = array<i64: 128, 8>}, {pipeline_mode = #tpu.pipeline_mode<synchronous>, transform_indices = @transform_2, window_bounds = array<i64: 1, 128>}, {transform_indices = @transform_3, window_bounds = array<i64: 64, 128>}, {transform_indices = @transform_4, window_bounds = array<i64: 64, 8>}, {transform_indices = @transform_5, window_bounds = array<i64: 1, 8, 128>}]} {
    %c0 = arith.constant 0 : index
    %c0_0 = arith.constant 0 : index
    %0 = vector.load %arg1[%c0, %c0_0] : memref<64x8xbf16, #tpu.memory_space<vmem>>, vector<64x8xbf16>
    %c0_1 = arith.constant 0 : index
    %c0_2 = arith.constant 0 : index
    %1 = vector.load %arg2[%c0_1, %c0_2] : memref<128x8xbf16, #tpu.memory_space<vmem>>, vector<128x8xbf16>
    %c0_3 = arith.constant 0 : index
    %c0_4 = arith.constant 0 : index
    %2 = vector.load %arg3[%c0_3, %c0_4] : memref<1x128xf32, #tpu.memory_space<vmem>>, vector<1x128xf32>
    %cst = arith.constant dense<0.000000e+00> : vector<64x128xf32>
    %3 = tpu.matmul %0, %1, %cst {dimension_numbers = #tpu.dot_dimension_numbers<[1], [1], [0], [0], [0, 0, 1, 0], [], []>} : vector<64x8xbf16>, vector<128x8xbf16>, vector<64x128xf32> -> vector<64x128xf32>
    %cst_5 = arith.constant 2.000000e+00 : f32
    %4 = vector.broadcast %cst_5 : f32 to vector<64x128xf32>
    %5 = arith.mulf %4, %3 : vector<64x128xf32>
    %6 = vector.broadcast %2 : vector<1x128xf32> to vector<64x128xf32>
    %7 = arith.subf %5, %6 : vector<64x128xf32>
    %8 = tpu.iota {dimensions = array<i32: 1>} : vector<64x128xi32>
    %cst_6 = arith.constant dense<0xFF800000> : vector<64xf32>
    %9 = vector.multi_reduction <maximumf>, %7, %cst_6 [1] : vector<64x128xf32> to vector<64xf32>
    %10 = vector.shape_cast %9 : vector<64xf32> to vector<64x1xf32>
    %11 = vector.broadcast %10 : vector<64x1xf32> to vector<64x128xf32>
    %12 = arith.cmpf oeq, %7, %11 : vector<64x128xf32>
    %c128_i32 = arith.constant 128 : i32
    %13 = vector.broadcast %c128_i32 : i32 to vector<64x128xi32>
    %14 = arith.select %12, %8, %13 : vector<64x128xi1>, vector<64x128xi32>
    %cst_7 = arith.constant dense<2147483647> : vector<64xi32>
    %15 = vector.multi_reduction <minsi>, %14, %cst_7 [1] : vector<64x128xi32> to vector<64xi32>
    %16 = vector.shape_cast %15 : vector<64xi32> to vector<64x1xi32>
    %17 = vector.broadcast %16 : vector<64x1xi32> to vector<64x128xi32>
    %18 = arith.cmpi eq, %8, %17 : vector<64x128xi32>
    %cst_8 = arith.constant 1.000000e+00 : f32
    %cst_9 = arith.constant 0.000000e+00 : f32
    %19 = vector.broadcast %cst_8 : f32 to vector<64x128xf32>
    %20 = vector.broadcast %cst_9 : f32 to vector<64x128xf32>
    %21 = arith.select %18, %19, %20 : vector<64x128xi1>, vector<64x128xf32>
    %22 = vector.shape_cast %21 : vector<64x128xf32> to vector<8x8x128xf32>
    %cst_10 = arith.constant dense<0.000000e+00> : vector<8x128xf32>
    %23 = vector.multi_reduction <add>, %22, %cst_10 [0] : vector<8x8x128xf32> to vector<8x128xf32>
    %24 = vector.shape_cast %23 : vector<8x128xf32> to vector<1x8x128xf32>
    %c0_11 = arith.constant 0 : index
    %c0_12 = arith.constant 0 : index
    %c0_13 = arith.constant 0 : index
    %25 = vector.load %arg6[%c0_11, %c0_12, %c0_13] : memref<1x8x128xf32, #tpu.memory_space<vmem>>, vector<1x8x128xf32>
    tpu.vector_store %arg6[%c0_11, %c0_12, %c0_13], %24 {strides = array<i32>} : memref<1x8x128xf32, #tpu.memory_space<vmem>>, vector<1x8x128xf32>,
    %c0_14 = arith.constant 0 : index
    %c0_15 = arith.constant 0 : index
    %26 = vector.load %arg4[%c0_14, %c0_15] : memref<64x128xbf16, #tpu.memory_space<vmem>>, vector<64x128xbf16>
    %27 = arith.extf %26 : vector<64x128xbf16> to vector<64x128xf32>
    %28 = arith.addf %7, %27 : vector<64x128xf32>
    %cst_16 = arith.constant dense<0xFF800000> : vector<64xf32>
    %29 = vector.multi_reduction <maximumf>, %28, %cst_16 [1] : vector<64x128xf32> to vector<64xf32>
    %30 = vector.shape_cast %29 : vector<64xf32> to vector<64x1xf32>
    %31 = vector.broadcast %30 : vector<64x1xf32> to vector<64x128xf32>
    %32 = arith.subf %28, %31 : vector<64x128xf32>
    %33 = math.exp %32 : vector<64x128xf32>
    %cst_17 = arith.constant dense<0.000000e+00> : vector<64xf32>
    %34 = vector.multi_reduction <add>, %33, %cst_17 [1] : vector<64x128xf32> to vector<64xf32>
    %35 = vector.shape_cast %34 : vector<64xf32> to vector<64x1xf32>
    %cst_18 = arith.constant 1.000000e+00 : f32
    %36 = vector.broadcast %cst_18 : f32 to vector<64x1xf32>
    %37 = arith.divf %36, %35 : vector<64x1xf32>
    %38 = vector.broadcast %37 : vector<64x1xf32> to vector<64x128xf32>
    %39 = arith.mulf %33, %38 : vector<64x128xf32>
    %40 = arith.truncf %39 : vector<64x128xf32> to vector<64x128xbf16>
    %cst_19 = arith.constant dense<0.000000e+00> : vector<64x8xf32>
    %41 = tpu.matmul %40, %1, %cst_19 {dimension_numbers = #tpu.dot_dimension_numbers<[1], [0], [0], [1], [0, 0, 1, 1], [], []>} : vector<64x128xbf16>, vector<128x8xbf16>, vector<64x8xf32> -> vector<64x8xf32>
    %c0_20 = arith.constant 0 : index
    %c0_21 = arith.constant 0 : index
    %42 = vector.load %arg5[%c0_20, %c0_21] : memref<64x8xf32, #tpu.memory_space<vmem>>, vector<64x8xf32>
    tpu.vector_store %arg5[%c0_20, %c0_21], %41 {strides = array<i32>} : memref<64x8xf32, #tpu.memory_space<vmem>>, vector<64x8xf32>,
    return
  }
  func.func @transform_0(%arg0: i32) -> (i32, i32) {
    %c0_i32 = arith.constant 0 : i32
    %c0_i32_0 = arith.constant 0 : i32
    return %arg0, %c0_i32 : i32, i32
  }
  func.func @transform_1(%arg0: i32) -> (i32, i32) {
    %c0_i32 = arith.constant 0 : i32
    %c0_i32_0 = arith.constant 0 : i32
    %c0_i32_1 = arith.constant 0 : i32
    return %c0_i32, %c0_i32_0 : i32, i32
  }
  func.func @transform_2(%arg0: i32) -> (i32, i32) {
    %c0_i32 = arith.constant 0 : i32
    %c0_i32_0 = arith.constant 0 : i32
    %c0_i32_1 = arith.constant 0 : i32
    return %c0_i32, %c0_i32_0 : i32, i32
  }
  func.func @transform_3(%arg0: i32) -> (i32, i32) {
    %c0_i32 = arith.constant 0 : i32
    %c0_i32_0 = arith.constant 0 : i32
    return %arg0, %c0_i32 : i32, i32
  }
  func.func @transform_4(%arg0: i32) -> (i32, i32) {
    %c0_i32 = arith.constant 0 : i32
    %c0_i32_0 = arith.constant 0 : i32
    return %arg0, %c0_i32 : i32, i32
  }
  func.func @transform_5(%arg0: i32) -> (i32, i32, i32) {
    %c0_i32 = arith.constant 0 : i32
    %c0_i32_0 = arith.constant 0 : i32
    %c0_i32_1 = arith.constant 0 : i32
    return %arg0, %c0_i32, %c0_i32_0 : i32, i32, i32
  }
}

</mosaic_0001>

<llo_original>
// kernel: tpu_custom_call.1
$region0: #{tpu_custom_call.1}
  #allocation0 [shape = 'u32[]', space=smem, size = 0x4, offset = 0x4, fixed_abs, tag = 'smem constant byte address 0x4 - core index']
  #allocation1 [shape = 'u32[144,128]{1,0:T(1,128)}', space=vmem, size = 0x12000, scoped, tag = 'internal scratch']
  %s0 = inlined_call_operand.vmem [shape: bf16[128,8], index: 0, kind: input, shape index: {}]
  %s1 = inlined_call_operand.vmem [shape: bf16[128,8], index: 1, kind: input, shape index: {}]
  %s2 = inlined_call_operand.vmem [shape: f32[1,128], index: 2, kind: input, shape index: {}]
  %s3 = inlined_call_operand.vmem [shape: bf16[128,128], index: 3, kind: input, shape index: {}]
  %s4 = inlined_call_operand.vmem [shape: f32[128,8], index: 4, kind: output, shape index: {0}]
  %s5 = inlined_call_operand.hbm [shape: f32[2,8,128], index: 5, kind: output, shape index: {1}]
  %6 = xla_tuple %s4, %s5
  %s7 = sld [smem:[#allocation0]]
  $region57: #{tpu_custom_call.1} parent=0
    _
  %s9 = ssub.s32 1, %s7
  %s10 = scalar_select 0, %s9, %s7
  $region1: #{tpu_custom_call.1} parent=0
    #allocation2 [shape = 'u8[8192]{0}', space=vmem, size = 0x2000, scoped, tag = 'output window, operand 1']
    #allocation3 [shape = 's32[2]{0}', space=sflag, size = 0x8, scoped, tag = 'scoped memory for tpu_custom_call.1']
    %11 = vsyncpa [#allocation3], 0
    %s12 = scalar_lea.sflag [#allocation3], 1
    %13 = vsyncpa %s12, 0
    loop: start=0, step=1, limit=4
    $region2: #{tpu_custom_call.1} parent=1 // loop_pre_header
      _
    $region3: #{tpu_custom_call.1} parent=1 // loop_header
      %s15 = sphi 0, %s19
      %p16 = scmp.ge.s32.totalorder %s15, 4
      %s25 = sphi 0, %s27
      %s28 = sphi 0, %s25
      %s29 = sphi 0, %s28
      %s45 = sphi 0, %s29
      %s49 = sphi 0, %s49
      %s51 = sphi 0, %s49
      %s52 = sphi 0, %s51
      %s66 = sphi 0, %s52
      %s70 = sphi 0, %s70
      %s72 = sphi 0, %s70
      %s73 = sphi 0, %s72
      %s87 = sphi 0, %s73
      %s93 = sphi 0, %s95
      %s96 = sphi 0, %s93
      %s97 = sphi 0, %s96
      %s113 = sphi 0, %s97
      %s119 = sphi 0, %s121
      %s122 = sphi 0, %s119
      %s123 = sphi 0, %s122
      %s139 = sphi 0, %s123
      %s145 = sphi 0, %s147
      %s148 = sphi 0, %s145
      %s149 = sphi 0, %s148
      %s165 = sphi 0, %s149
    $region4: #{tpu_custom_call.1} parent=1 // loop_header_branch
      %18 = sbr.rel (%p16) target = $region8
    $region5: #{tpu_custom_call.1} parent=1 // loop_body
      %s20 = ssub.s32 %s15, 1
      %s21 = ssub.s32 %s15, 2
      %s22 = sadd.s32 %s15, 1
      %s23 = ssub.s32 %s15, %s22
      %p24 = scmp.eq.s32.totalorder %s23, 0
      %s26 = sadd.s32 %s25, 1
      %s27 = scalar_select %p24, %s25, %s26
      %p30 = pneg %p24
      %p31 = scmp.eq.s32.totalorder %s15, 1
      %p32 = por %p30, %p31
      %p33 = scmp.ne.s32.totalorder %s25, %s28
      %p34 = scmp.eq.s32.totalorder %s15, 0
      %p35 = por %p33, %p34
      %p36 = scmp.ne.s32.totalorder %s25, %s28
      %p37 = scmp.eq.s32.totalorder %s20, 1
      %p38 = por %p36, %p37
      %p39 = scmp.ne.s32.totalorder %s28, %s29
      %p40 = scmp.eq.s32.totalorder %s20, 0
      %p41 = por %p39, %p40
      %p42 = scmp.ne.s32.totalorder %s28, %s29
      %p43 = scmp.eq.s32.totalorder %s21, 1
      %p44 = por %p42, %p43
      %p46 = scmp.ne.s32.totalorder %s29, %s45
      %p47 = scmp.eq.s32.totalorder %s21, 0
      %p48 = por %p46, %p47
      %s50 = sadd.s32 %s49, 1
      %p53 = scmp.eq.s32.totalorder %s15, 1
      %p54 = scmp.ne.s32.totalorder %s49, %s51
      %p55 = scmp.eq.s32.totalorder %s15, 0
      %p56 = por %p54, %p55
      %p57 = scmp.ne.s32.totalorder %s49, %s51
      %p58 = scmp.eq.s32.totalorder %s20, 1
      %p59 = por %p57, %p58
      %p60 = scmp.ne.s32.totalorder %s51, %s52
      %p61 = scmp.eq.s32.totalorder %s20, 0
      %p62 = por %p60, %p61
      %p63 = scmp.ne.s32.totalorder %s51, %s52
      %p64 = scmp.eq.s32.totalorder %s21, 1
      %p65 = por %p63, %p64
      %p67 = scmp.ne.s32.totalorder %s52, %s66
      %p68 = scmp.eq.s32.totalorder %s21, 0
      %p69 = por %p67, %p68
      %s71 = sadd.s32 %s70, 1
      %p74 = scmp.eq.s32.totalorder %s15, 1
      %p75 = scmp.ne.s32.totalorder %s70, %s72
      %p76 = scmp.eq.s32.totalorder %s15, 0
      %p77 = por %p75, %p76
      %p78 = scmp.ne.s32.totalorder %s70, %s72
      %p79 = scmp.eq.s32.totalorder %s20, 1
      %p80 = por %p78, %p79
      %p81 = scmp.ne.s32.totalorder %s72, %s73
      %p82 = scmp.eq.s32.totalorder %s20, 0
      %p83 = por %p81, %p82
      %p84 = scmp.ne.s32.totalorder %s72, %s73
      %p85 = scmp.eq.s32.totalorder %s21, 1
      %p86 = por %p84, %p85
      %p88 = scmp.ne.s32.totalorder %s73, %s87
      %p89 = scmp.eq.s32.totalorder %s21, 0
      %p90 = por %p88, %p89
      %s91 = ssub.s32 %s15, %s22
      %p92 = scmp.eq.s32.totalorder %s91, 0
      %s94 = sadd.s32 %s93, 1
      %s95 = scalar_select %p92, %s93, %s94
      %p98 = pneg %p92
      %p99 = scmp.eq.s32.totalorder %s15, 1
      %p100 = por %p98, %p99
      %p101 = scmp.ne.s32.totalorder %s93, %s96
      %p102 = scmp.eq.s32.totalorder %s15, 0
      %p103 = por %p101, %p102
      %p104 = scmp.ne.s32.totalorder %s93, %s96
      %p105 = scmp.eq.s32.totalorder %s20, 1
      %p106 = por %p104, %p105
      %p107 = scmp.ne.s32.totalorder %s96, %s97
      %p108 = scmp.eq.s32.totalorder %s20, 0
      %p109 = por %p107, %p108
      %p110 = scmp.ne.s32.totalorder %s96, %s97
      %p111 = scmp.eq.s32.totalorder %s21, 1
      %p112 = por %p110, %p111
      %p114 = scmp.ne.s32.totalorder %s97, %s113
      %p115 = scmp.eq.s32.totalorder %s21, 0
      %p116 = por %p114, %p115
      %s117 = ssub.s32 %s15, %s22
      %p118 = scmp.eq.s32.totalorder %s117, 0
      %s120 = sadd.s32 %s119, 1
      %s121 = scalar_select %p118, %s119, %s120
      %p124 = pneg %p118
      %p125 = scmp.eq.s32.totalorder %s15, 1
      %p126 = por %p124, %p125
      %p127 = scmp.ne.s32.totalorder %s119, %s122
      %p128 = scmp.eq.s32.totalorder %s15, 0
      %p129 = por %p127, %p128
      %p130 = scmp.ne.s32.totalorder %s119, %s122
      %p131 = scmp.eq.s32.totalorder %s20, 1
      %p132 = por %p130, %p131
      %p133 = scmp.ne.s32.totalorder %s122, %s123
      %p134 = scmp.eq.s32.totalorder %s20, 0
      %p135 = por %p133, %p134
      %p136 = scmp.ne.s32.totalorder %s122, %s123
      %p137 = scmp.eq.s32.totalorder %s21, 1
      %p138 = por %p136, %p137
      %p140 = scmp.ne.s32.totalorder %s123, %s139
      %p141 = scmp.eq.s32.totalorder %s21, 0
      %p142 = por %p140, %p141
      %s143 = ssub.s32 %s15, %s22
      %p144 = scmp.eq.s32.totalorder %s143, 0
      %s146 = sadd.s32 %s145, 1
      %s147 = scalar_select %p144, %s145, %s146
      %p150 = pneg %p144
      %p151 = scmp.eq.s32.totalorder %s15, 1
      %p152 = por %p150, %p151
      %p153 = scmp.ne.s32.totalorder %s145, %s148
      %p154 = scmp.eq.s32.totalorder %s15, 0
      %p155 = por %p153, %p154
      %p156 = scmp.ne.s32.totalorder %s145, %s148
      %p157 = scmp.eq.s32.totalorder %s20, 1
      %p158 = por %p156, %p157
      %p159 = scmp.ne.s32.totalorder %s148, %s149
      %p160 = scmp.eq.s32.totalorder %s20, 0
      %p161 = por %p159, %p160
      %p162 = scmp.ne.s32.totalorder %s148, %s149
      %p163 = scmp.eq.s32.totalorder %s21, 1
      %p164 = por %p162, %p163
      %p166 = scmp.ne.s32.totalorder %s149, %s165
      %p167 = scmp.eq.s32.totalorder %s21, 0
      %p168 = por %p166, %p167
      %p169 = scmp.le.s32.totalorder 1, %s15
      %p170 = scmp.lt.s32.totalorder %s15, 3
      %p171 = pnand %p169, %p170
      %p172 = pneg %p171
      // Predicated region
      $region9: #{tpu_custom_call.1} parent=5 // pred_check
        _
      $region10: #{tpu_custom_call.1} parent=5 // pred_check_branch
        %174 = sbr.rel (%p171) target = $region12
      $region11: #{tpu_custom_call.1} parent=5 // pred_region
        %s175 = ssub.s32 %s15, 1
        // Predicated region
        $region13: #{tpu_custom_call.1} parent=11 // pred_check
          %p176 = pneg %p62
        $region14: #{tpu_custom_call.1} parent=11 // pred_check_branch
          %178 = sbr.rel (%p176) target = $region16
        $region15: #{tpu_custom_call.1} parent=11 // pred_region
          _
        $region16: #{tpu_custom_call.1} parent=11 // pred_fallthru
          _
        // Predicated region
        $region17: #{tpu_custom_call.1} parent=11 // pred_check
          %p179 = pneg %p83
        $region18: #{tpu_custom_call.1} parent=11 // pred_check_branch
          %181 = sbr.rel (%p179) target = $region20
        $region19: #{tpu_custom_call.1} parent=11 // pred_region
          _
        $region20: #{tpu_custom_call.1} parent=11 // pred_fallthru
          _
      $region12: #{tpu_custom_call.1} parent=5 // pred_fallthru
        _
      %p182 = scmp.lt.s32.totalorder %s15, 2
      // Predicated region
      $region21: #{tpu_custom_call.1} parent=5 // pred_check
        %p183 = pneg %p182
      $region22: #{tpu_custom_call.1} parent=5 // pred_check_branch
        %185 = sbr.rel (%p183) target = $region24
      $region23: #{tpu_custom_call.1} parent=5 // pred_region
        // Predicated region
        $region25: #{tpu_custom_call.1} parent=23 // pred_check
          %p186 = pneg %p35
        $region26: #{tpu_custom_call.1} parent=23 // pred_check_branch
          %188 = sbr.rel (%p186) target = $region28
        $region27: #{tpu_custom_call.1} parent=23 // pred_region
          %s189 = smul.u32 8, %s15
          %p190 = scmp.lt.s32.totalorder %s189, 15
          %s191 = scalar_select %p190, %s189, 15
          %s192 = smul.addr %s191, 4
          %s193 = scalar_lea.vmem %s0, %s192
          %s194 = smul.u32 8, %s15
        $region28: #{tpu_custom_call.1} parent=23 // pred_fallthru
          _
        // Predicated region
        $region29: #{tpu_custom_call.1} parent=23 // pred_check
          %p195 = pneg %p103
        $region30: #{tpu_custom_call.1} parent=23 // pred_check_branch
          %197 = sbr.rel (%p195) target = $region32
        $region31: #{tpu_custom_call.1} parent=23 // pred_region
          %s198 = smul.u32 8, %s15
          %p199 = scmp.lt.s32.totalorder %s198, 15
          %s200 = scalar_select %p199, %s198, 15
          %s201 = smul.addr %s200, 4
          %s202 = scalar_lea.vmem %s3, %s201
          %s203 = smul.u32 8, %s15
        $region32: #{tpu_custom_call.1} parent=23 // pred_fallthru
          _
      $region24: #{tpu_custom_call.1} parent=5 // pred_fallthru
        _
      %p204 = scmp.le.s32.totalorder 1, %s15
      %p205 = scmp.lt.s32.totalorder %s15, 3
      %p206 = pnand %p204, %p205
      %p207 = pneg %p206
      // Predicated region
      $region33: #{tpu_custom_call.1} parent=5 // pred_check
        _
      $region34: #{tpu_custom_call.1} parent=5 // pred_check_branch
        %209 = sbr.rel (%p206) target = $region36
      $region35: #{tpu_custom_call.1} parent=5 // pred_region
        %s210 = ssub.s32 %s15, 1
        %s211 = smul.u32 8, %s20
        %p212 = scmp.lt.s32.totalorder %s211, 15
        %s213 = scalar_select %p212, %s211, 15
        %s214 = smul.addr %s213, 4
        %s215 = scalar_lea.vmem %s0, %s214
        %p216 = pneg %p41
        %p217 = pneg %p38
        %p218 = pneg %p62
        %p219 = pneg %p59
        %p220 = pneg %p83
        %p221 = pneg %p80
        %s222 = smul.u32 8, %s20
        %p223 = scmp.lt.s32.totalorder %s222, 15
        %s224 = scalar_select %p223, %s222, 15
        %s225 = smul.addr %s224, 4
        %s226 = scalar_lea.vmem %s3, %s225
        %p227 = pneg %p109
        %p228 = pneg %p106
        %p229 = pneg %p135
        %p230 = pneg %p132
        %s231 = smul.u32 8, %s20
        %p232 = scmp.lt.s32.totalorder %s231, 15
        %s233 = scalar_select %p232, %s231, 15
        %s234 = smul.addr %s233, 8
        %s235 = scalar_lea.vmem %s4, %s234
        %p236 = pneg %p161
        %p237 = pneg %p158
        %s238 = sand.u32 %s148, 1
        %s239 = scalar_lea.sflag [#allocation3], %s238
        %s240 = sand.u32 %s148, 1
        %s241 = smul.addr %s240, 8
        %s242 = scalar_lea.vmem [#allocation2], %s241
        %s243 = smul.u32 8, %s20
        %p244 = scmp.lt.s32.totalorder %s243, 15
        %s245 = scalar_select %p244, %s243, 15
        %s246 = smul.addr %s245, 4
        %s247 = scalar_lea.vmem %s0, %s246
        %s248 = smul.u32 8, %s20
        %s249 = smul.u32 8, %s20
        %p250 = scmp.lt.s32.totalorder %s249, 15
        %s251 = scalar_select %p250, %s249, 15
        %s252 = smul.addr %s251, 4
        %s253 = scalar_lea.vmem %s3, %s252
        %s254 = smul.u32 8, %s20
        %s255 = smul.u32 8, %s20
        %p256 = scmp.lt.s32.totalorder %s255, 15
        %s257 = scalar_select %p256, %s255, 15
        %s258 = smul.addr %s257, 8
        %s259 = scalar_lea.vmem %s4, %s258
        %s260 = smul.u32 8, %s20
        %v262 = vld [vmem:[%s247] sm:$0xf]
        %v263 = vld [vmem:[%s247 + $0x4] sm:$0xf]
        %v264 = vld [vmem:[%s247 + $0x8] sm:$0xf]
        %v265 = vld [vmem:[%s247 + $0xc] sm:$0xf]
        %v266 = vld [vmem:[%s247 + $0x10] sm:$0xf]
        %v267 = vld [vmem:[%s247 + $0x14] sm:$0xf]
        %v268 = vld [vmem:[%s247 + $0x18] sm:$0xf]
        %v269 = vld [vmem:[%s247 + $0x1c] sm:$0xf]
        %v270 = vld [vmem:[%s1] sm:$0xf]
        %v271 = vld [vmem:[%s1 + $0x4] sm:$0xf]
        %v272 = vld [vmem:[%s1 + $0x8] sm:$0xf]
        %v273 = vld [vmem:[%s1 + $0xc] sm:$0xf]
        %v274 = vld [vmem:[%s1 + $0x10] sm:$0xf]
        %v275 = vld [vmem:[%s1 + $0x14] sm:$0xf]
        %v276 = vld [vmem:[%s1 + $0x18] sm:$0xf]
        %v277 = vld [vmem:[%s1 + $0x1c] sm:$0xf]
        %v278 = vld [vmem:[%s1 + $0x20] sm:$0xf]
        %v279 = vld [vmem:[%s1 + $0x24] sm:$0xf]
        %v280 = vld [vmem:[%s1 + $0x28] sm:$0xf]
        %v281 = vld [vmem:[%s1 + $0x2c] sm:$0xf]
        %v282 = vld [vmem:[%s1 + $0x30] sm:$0xf]
        %v283 = vld [vmem:[%s1 + $0x34] sm:$0xf]
        %v284 = vld [vmem:[%s1 + $0x38] sm:$0xf]
        %v285 = vld [vmem:[%s1 + $0x3c] sm:$0xf]
        %v286 = vld [vmem:[%s2] sm:$0x1]
        %v295 = vunpack.c.l.b16 %v262
        %v296 = vunpack.c.l.b16 %v263
        %v297 = vunpack.c.l.b16 %v264
        %v298 = vunpack.c.l.b16 %v265
        %v299 = vunpack.c.l.b16 %v266
        %v300 = vunpack.c.l.b16 %v267
        %v301 = vunpack.c.l.b16 %v268
        %v302 = vunpack.c.l.b16 %v269
        %v303 = vpack.c.b16 %v296, %v295
        %v304 = vpack.c.b16 %v298, %v297
        %v305 = vpack.c.b16 %v300, %v299
        %v306 = vpack.c.b16 %v302, %v301
        %v323 = vunpack.c.l.b16 %v270
        %v324 = vunpack.c.l.b16 %v271
        %v325 = vunpack.c.l.b16 %v272
        %v326 = vunpack.c.l.b16 %v273
        %v327 = vunpack.c.l.b16 %v274
        %v328 = vunpack.c.l.b16 %v275
        %v329 = vunpack.c.l.b16 %v276
        %v330 = vunpack.c.l.b16 %v277
        %v331 = vunpack.c.l.b16 %v278
        %v332 = vunpack.c.l.b16 %v279
        %v333 = vunpack.c.l.b16 %v280
        %v334 = vunpack.c.l.b16 %v281
        %v335 = vunpack.c.l.b16 %v282
        %v336 = vunpack.c.l.b16 %v283
        %v337 = vunpack.c.l.b16 %v284
        %v338 = vunpack.c.l.b16 %v285
        %v339 = vpack.c.b16 %v324, %v323
        %v340 = vpack.c.b16 %v326, %v325
        %v341 = vpack.c.b16 %v328, %v327
        %v342 = vpack.c.b16 %v330, %v329
        %v343 = vpack.c.b16 %v332, %v331
        %v344 = vpack.c.b16 %v334, %v333
        %v345 = vpack.c.b16 %v336, %v335
        %v346 = vpack.c.b16 %v338, %v337
        %vm347 = vcmask 64512
        %v349 = vsel %vm347, %v303, 0
        %v352 = vsel %vm347, %v304, 0
        %v355 = vsel %vm347, %v305, 0
        %v358 = vsel %vm347, %v306, 0
        %v361 = vsel %vm347, %v339, 0
        %v364 = vsel %vm347, %v340, 0
        %v367 = vsel %vm347, %v341, 0
        %v370 = vsel %vm347, %v342, 0
        %v373 = vsel %vm347, %v343, 0
        %v376 = vsel %vm347, %v344, 0
        %v379 = vsel %vm347, %v345, 0
        %v382 = vsel %vm347, %v346, 0
        %384 = vmatprep.subr.bf16.mxu0 0
        %385 = vmatpush1.bf16.xpose.msra.mxu0 %v361
        %386 = vmatprep.subr.bf16.mxu0 0
        %387 = vmatpush1.bf16.xpose.msra.mxu0 %v364
        %388 = vmatprep.subr.bf16.mxu0 0
        %389 = vmatpush1.bf16.xpose.msra.mxu0 %v367
        %390 = vmatprep.subr.bf16.mxu0 0
        %391 = vmatpush1.bf16.xpose.msra.mxu0 %v370
        %392 = vmatprep.subr.bf16.mxu0 0
        %393 = vmatpush1.bf16.xpose.msra.mxu0 %v373
        %394 = vmatprep.subr.bf16.mxu0 0
        %395 = vmatpush1.bf16.xpose.msra.mxu0 %v376
        %396 = vmatprep.subr.bf16.mxu0 0
        %397 = vmatpush1.bf16.xpose.msra.mxu0 %v379
        %398 = vmatprep.subr.bf16.mxu0 0
        %399 = vmatpush1.bf16.xpose.msra.mxu0 %v382
        %400 = vmatprep.subr.bf16.mxu0 0
        %401 = vmatpush1.bf16.xpose.msra.mxu0 0
        %402 = vmatprep.subr.bf16.mxu0 0
        %403 = vmatpush1.bf16.xpose.msra.mxu0 0
        %404 = vmatprep.subr.bf16.mxu0 0
        %405 = vmatpush1.bf16.xpose.msra.mxu0 0
        %406 = vmatprep.subr.bf16.mxu0 0
        %407 = vmatpush1.bf16.xpose.msra.mxu0 0
        %408 = vmatprep.subr.bf16.mxu0 0
        %409 = vmatpush1.bf16.xpose.msra.mxu0 0
        %410 = vmatprep.subr.bf16.mxu0 0
        %411 = vmatpush1.bf16.xpose.msra.mxu0 0
        %412 = vmatprep.subr.bf16.mxu0 0
        %413 = vmatpush1.bf16.xpose.msra.mxu0 0
        %414 = vmatprep.subr.bf16.mxu0 0
        %415 = vmatpush1.bf16.xpose.msra.mxu0 0
        %416 = vmatprep.mubr.bf16.mxu0 0
        %417 = vmatmul.mubr.bf16.gmra.mrb[0].mxu0 %v349
        %v418 = vpop.f32.mrb[0].mxu0
        %v419 = vadd.f32 0.0, %v418
        %v420 = vpop.f32.mrb[0].mxu0
        %v421 = vpop.f32.mrb[0].mxu0
        %v422 = vadd.f32 0.0, %v421
        %v423 = vpop.f32.mrb[0].mxu0
        %424 = vmatprep.mubr.bf16.mxu0 0
        %425 = vmatmul.mubr.bf16.gmra.mrb[0].mxu0 %v352
        %v426 = vpop.f32.mrb[0].mxu0
        %v427 = vadd.f32 0.0, %v426
        %v428 = vpop.f32.mrb[0].mxu0
        %v429 = vpop.f32.mrb[0].mxu0
        %v430 = vadd.f32 0.0, %v429
        %v431 = vpop.f32.mrb[0].mxu0
        %432 = vmatprep.mubr.bf16.mxu0 0
        %433 = vmatmul.mubr.bf16.gmra.mrb[0].mxu0 %v355
        %v434 = vpop.f32.mrb[0].mxu0
        %v435 = vadd.f32 0.0, %v434
        %v436 = vpop.f32.mrb[0].mxu0
        %v437 = vpop.f32.mrb[0].mxu0
        %v438 = vadd.f32 0.0, %v437
        %v439 = vpop.f32.mrb[0].mxu0
        %440 = vmatprep.mubr.bf16.mxu0 0
        %441 = vmatmul.mubr.bf16.gmra.mrb[0].mxu0 %v358
        %v442 = vpop.f32.mrb[0].mxu0
        %v443 = vadd.f32 0.0, %v442
        %v444 = vpop.f32.mrb[0].mxu0
        %v445 = vpop.f32.mrb[0].mxu0
        %v446 = vadd.f32 0.0, %v445
        %v447 = vpop.f32.mrb[0].mxu0
        %448 = vdwg.mxu0
        %v449 = vmul.f32 %v419, 2.0
        %v450 = vmul.f32 %v422, 2.0
        %v451 = vmul.f32 %v427, 2.0
        %v452 = vmul.f32 %v430, 2.0
        %v453 = vmul.f32 %v435, 2.0
        %v454 = vmul.f32 %v438, 2.0
        %v455 = vmul.f32 %v443, 2.0
        %v456 = vmul.f32 %v446, 2.0
        %v458 = vlaneseq
        %v459 = vshrl.u32 %v458, 7
        %v460 = vsub.s32 0, %v459
        %v461 = vrot.slane %v286, %v460
        %v463 = vsub.f32 %v449, %v461
        %v464 = vsub.f32 %v450, %v461
        %v465 = vsub.f32 %v451, %v461
        %v466 = vsub.f32 %v452, %v461
        %v467 = vsub.f32 %v453, %v461
        %v468 = vsub.f32 %v454, %v461
        %v469 = vsub.f32 %v455, %v461
        %v470 = vsub.f32 %v456, %v461
        %v471 = vlaneseq
        %v472 = vand.u32 %v471, 127
        %473 = vmax.xlane.f32.xlu0 %v463
        %v474 = vpop.xlane.xlu0 %473
        %475 = vmax.xlane.f32.xlu0 %v464
        %v476 = vpop.xlane.xlu0 %475
        %477 = vmax.xlane.f32.xlu0 %v465
        %v478 = vpop.xlane.xlu0 %477
        %479 = vmax.xlane.f32.xlu0 %v466
        %v480 = vpop.xlane.xlu0 %479
        %481 = vmax.xlane.f32.xlu0 %v467
        %v482 = vpop.xlane.xlu0 %481
        %483 = vmax.xlane.f32.xlu0 %v468
        %v484 = vpop.xlane.xlu0 %483
        %485 = vmax.xlane.f32.xlu0 %v469
        %v486 = vpop.xlane.xlu0 %485
        %487 = vmax.xlane.f32.xlu0 %v470
        %v488 = vpop.xlane.xlu0 %487
        %vm489 = vcmp.eq.f32.partialorder %v463, %v474
        %vm490 = vcmp.eq.f32.partialorder %v464, %v476
        %vm491 = vcmp.eq.f32.partialorder %v465, %v478
        %vm492 = vcmp.eq.f32.partialorder %v466, %v480
        %vm493 = vcmp.eq.f32.partialorder %v467, %v482
        %vm494 = vcmp.eq.f32.partialorder %v468, %v484
        %vm495 = vcmp.eq.f32.partialorder %v469, %v486
        %vm496 = vcmp.eq.f32.partialorder %v470, %v488
        %v497 = vsel %vm489, %v472, 128
        %v498 = vsel %vm490, %v472, 128
        %v499 = vsel %vm491, %v472, 128
        %v500 = vsel %vm492, %v472, 128
        %v501 = vsel %vm493, %v472, 128
        %v502 = vsel %vm494, %v472, 128
        %v503 = vsel %vm495, %v472, 128
        %v504 = vsel %vm496, %v472, 128
        %v505 = vand.u32 %v497, 65535
        %v506 = vshra.s32 %v497, 16
        %v507 = vcvt.s32.f32 %v505
        %v508 = vcvt.s32.f32 %v506
        %509 = vmin.xlane.f32.xlu0 %v508
        %v510 = vpop.xlane.xlu0 %509
        %vm511 = vcmp.eq.f32.partialorder %v508, %v510
        %v512 = vsel %vm511, %v507, inf
        %513 = vmin.xlane.f32.xlu0 %v512
        %v514 = vpop.xlane.xlu0 %513
        %v515 = vcvt.f32.s32 %v514
        %v516 = vcvt.f32.s32 %v510
        %v517 = vshll.u32 %v516, 16
        %v518 = vadd.s32 %v517, %v515
        %v519 = vand.u32 %v498, 65535
        %v520 = vshra.s32 %v498, 16
        %v521 = vcvt.s32.f32 %v519
        %v522 = vcvt.s32.f32 %v520
        %523 = vmin.xlane.f32.xlu0 %v522
        %v524 = vpop.xlane.xlu0 %523
        %vm525 = vcmp.eq.f32.partialorder %v522, %v524
        %v526 = vsel %vm525, %v521, inf
        %527 = vmin.xlane.f32.xlu0 %v526
        %v528 = vpop.xlane.xlu0 %527
        %v529 = vcvt.f32.s32 %v528
        %v530 = vcvt.f32.s32 %v524
        %v531 = vshll.u32 %v530, 16
        %v532 = vadd.s32 %v531, %v529
        %v533 = vand.u32 %v499, 65535
        %v534 = vshra.s32 %v499, 16
        %v535 = vcvt.s32.f32 %v533
        %v536 = vcvt.s32.f32 %v534
        %537 = vmin.xlane.f32.xlu0 %v536
        %v538 = vpop.xlane.xlu0 %537
        %vm539 = vcmp.eq.f32.partialorder %v536, %v538
        %v540 = vsel %vm539, %v535, inf
        %541 = vmin.xlane.f32.xlu0 %v540
        %v542 = vpop.xlane.xlu0 %541
        %v543 = vcvt.f32.s32 %v542
        %v544 = vcvt.f32.s32 %v538
        %v545 = vshll.u32 %v544, 16
        %v546 = vadd.s32 %v545, %v543
        %v547 = vand.u32 %v500, 65535
        %v548 = vshra.s32 %v500, 16
        %v549 = vcvt.s32.f32 %v547
        %v550 = vcvt.s32.f32 %v548
        %551 = vmin.xlane.f32.xlu0 %v550
        %v552 = vpop.xlane.xlu0 %551
        %vm553 = vcmp.eq.f32.partialorder %v550, %v552
        %v554 = vsel %vm553, %v549, inf
        %555 = vmin.xlane.f32.xlu0 %v554
        %v556 = vpop.xlane.xlu0 %555
        %v557 = vcvt.f32.s32 %v556
        %v558 = vcvt.f32.s32 %v552
        %v559 = vshll.u32 %v558, 16
        %v560 = vadd.s32 %v559, %v557
        %v561 = vand.u32 %v501, 65535
        %v562 = vshra.s32 %v501, 16
        %v563 = vcvt.s32.f32 %v561
        %v564 = vcvt.s32.f32 %v562
        %565 = vmin.xlane.f32.xlu0 %v564
        %v566 = vpop.xlane.xlu0 %565
        %vm567 = vcmp.eq.f32.partialorder %v564, %v566
        %v568 = vsel %vm567, %v563, inf
        %569 = vmin.xlane.f32.xlu0 %v568
        %v570 = vpop.xlane.xlu0 %569
        %v571 = vcvt.f32.s32 %v570
        %v572 = vcvt.f32.s32 %v566
        %v573 = vshll.u32 %v572, 16
        %v574 = vadd.s32 %v573, %v571
        %v575 = vand.u32 %v502, 65535
        %v576 = vshra.s32 %v502, 16
        %v577 = vcvt.s32.f32 %v575
        %v578 = vcvt.s32.f32 %v576
        %579 = vmin.xlane.f32.xlu0 %v578
        %v580 = vpop.xlane.xlu0 %579
        %vm581 = vcmp.eq.f32.partialorder %v578, %v580
        %v582 = vsel %vm581, %v577, inf
        %583 = vmin.xlane.f32.xlu0 %v582
        %v584 = vpop.xlane.xlu0 %583
        %v585 = vcvt.f32.s32 %v584
        %v586 = vcvt.f32.s32 %v580
        %v587 = vshll.u32 %v586, 16
        %v588 = vadd.s32 %v587, %v585
        %v589 = vand.u32 %v503, 65535
        %v590 = vshra.s32 %v503, 16
        %v591 = vcvt.s32.f32 %v589
        %v592 = vcvt.s32.f32 %v590
        %593 = vmin.xlane.f32.xlu0 %v592
        %v594 = vpop.xlane.xlu0 %593
        %vm595 = vcmp.eq.f32.partialorder %v592, %v594
        %v596 = vsel %vm595, %v591, inf
        %597 = vmin.xlane.f32.xlu0 %v596
        %v598 = vpop.xlane.xlu0 %597
        %v599 = vcvt.f32.s32 %v598
        %v600 = vcvt.f32.s32 %v594
        %v601 = vshll.u32 %v600, 16
        %v602 = vadd.s32 %v601, %v599
        %v603 = vand.u32 %v504, 65535
        %v604 = vshra.s32 %v504, 16
        %v605 = vcvt.s32.f32 %v603
        %v606 = vcvt.s32.f32 %v604
        %607 = vmin.xlane.f32.xlu0 %v606
        %v608 = vpop.xlane.xlu0 %607
        %vm609 = vcmp.eq.f32.partialorder %v606, %v608
        %v610 = vsel %vm609, %v605, inf
        %611 = vmin.xlane.f32.xlu0 %v610
        %v612 = vpop.xlane.xlu0 %611
        %v613 = vcvt.f32.s32 %v612
        %v614 = vcvt.f32.s32 %v608
        %v615 = vshll.u32 %v614, 16
        %v616 = vadd.s32 %v615, %v613
        %vm617 = vcmp.eq.s32.totalorder %v472, %v518
        %vm618 = vcmp.eq.s32.totalorder %v472, %v532
        %vm619 = vcmp.eq.s32.totalorder %v472, %v546
        %vm620 = vcmp.eq.s32.totalorder %v472, %v560
        %vm621 = vcmp.eq.s32.totalorder %v472, %v574
        %vm622 = vcmp.eq.s32.totalorder %v472, %v588
        %vm623 = vcmp.eq.s32.totalorder %v472, %v602
        %vm624 = vcmp.eq.s32.totalorder %v472, %v616
        %v625 = vsel %vm617, 1.0, 0.0
        %v626 = vsel %vm618, 1.0, 0.0
        %v627 = vsel %vm619, 1.0, 0.0
        %v628 = vsel %vm620, 1.0, 0.0
        %v629 = vsel %vm621, 1.0, 0.0
        %v630 = vsel %vm622, 1.0, 0.0
        %v631 = vsel %vm623, 1.0, 0.0
        %v632 = vsel %vm624, 1.0, 0.0
        %v633 = vadd.f32 %v625, %v626
        %v634 = vadd.f32 %v633, %v627
        %v635 = vadd.f32 %v634, %v628
        %v636 = vadd.f32 %v635, %v629
        %v637 = vadd.f32 %v636, %v630
        %v638 = vadd.f32 %v637, %v631
        %v639 = vadd.f32 %v638, %v632
        %640 = vst [vmem:[%s242] sm:$0xff] %v639
        %v641 = vld [vmem:[%s253] sm:$0xf]
        %v642 = vld [vmem:[%s253 + $0x4] sm:$0xf]
        %v643 = vld [vmem:[%s253 + $0x8] sm:$0xf]
        %v644 = vld [vmem:[%s253 + $0xc] sm:$0xf]
        %v645 = vld [vmem:[%s253 + $0x10] sm:$0xf]
        %v646 = vld [vmem:[%s253 + $0x14] sm:$0xf]
        %v647 = vld [vmem:[%s253 + $0x18] sm:$0xf]
        %v648 = vld [vmem:[%s253 + $0x1c] sm:$0xf]
        %v649 = vunpack.c.l.bf16 %v641
        %v650 = vunpack.c.l.bf16 %v642
        %v651 = vunpack.c.l.bf16 %v643
        %v652 = vunpack.c.l.bf16 %v644
        %v653 = vunpack.c.l.bf16 %v645
        %v654 = vunpack.c.l.bf16 %v646
        %v655 = vunpack.c.l.bf16 %v647
        %v656 = vunpack.c.l.bf16 %v648
        %v657 = vadd.f32 %v463, %v649
        %v658 = vadd.f32 %v464, %v650
        %v659 = vadd.f32 %v465, %v651
        %v660 = vadd.f32 %v466, %v652
        %v661 = vadd.f32 %v467, %v653
        %v662 = vadd.f32 %v468, %v654
        %v663 = vadd.f32 %v469, %v655
        %v664 = vadd.f32 %v470, %v656
        %665 = vmax.xlane.f32.xlu0 %v657
        %v666 = vpop.xlane.xlu0 %665
        %667 = vmax.xlane.f32.xlu0 %v658
        %v668 = vpop.xlane.xlu0 %667
        %669 = vmax.xlane.f32.xlu0 %v659
        %v670 = vpop.xlane.xlu0 %669
        %671 = vmax.xlane.f32.xlu0 %v660
        %v672 = vpop.xlane.xlu0 %671
        %673 = vmax.xlane.f32.xlu0 %v661
        %v674 = vpop.xlane.xlu0 %673
        %675 = vmax.xlane.f32.xlu0 %v662
        %v676 = vpop.xlane.xlu0 %675
        %677 = vmax.xlane.f32.xlu0 %v663
        %v678 = vpop.xlane.xlu0 %677
        %679 = vmax.xlane.f32.xlu0 %v664
        %v680 = vpop.xlane.xlu0 %679
        %v681 = vsub.f32 %v657, %v666
        %v682 = vsub.f32 %v658, %v668
        %v683 = vsub.f32 %v659, %v670
        %v684 = vsub.f32 %v660, %v672
        %v685 = vsub.f32 %v661, %v674
        %v686 = vsub.f32 %v662, %v676
        %v687 = vsub.f32 %v663, %v678
        %v688 = vsub.f32 %v664, %v680
        %v689 = vmul.f32 %v681, 1.442695
        %v690 = vpow.pop %v689
        %v691 = vmul.f32 %v682, 1.442695
        %v692 = vpow.pop %v691
        %v693 = vmul.f32 %v683, 1.442695
        %v694 = vpow.pop %v693
        %v695 = vmul.f32 %v684, 1.442695
        %v696 = vpow.pop %v695
        %v697 = vmul.f32 %v685, 1.442695
        %v698 = vpow.pop %v697
        %v699 = vmul.f32 %v686, 1.442695
        %v700 = vpow.pop %v699
        %v701 = vmul.f32 %v687, 1.442695
        %v702 = vpow.pop %v701
        %v703 = vmul.f32 %v688, 1.442695
        %v704 = vpow.pop %v703
        %705 = vadd.xlane.f32.xlu0 %v690
        %v706 = vpop.xlane.xlu0 %705
        %707 = vadd.xlane.f32.xlu0 %v692
        %v708 = vpop.xlane.xlu0 %707
        %709 = vadd.xlane.f32.xlu0 %v694
        %v710 = vpop.xlane.xlu0 %709
        %711 = vadd.xlane.f32.xlu0 %v696
        %v712 = vpop.xlane.xlu0 %711
        %713 = vadd.xlane.f32.xlu0 %v698
        %v714 = vpop.xlane.xlu0 %713
        %715 = vadd.xlane.f32.xlu0 %v700
        %v716 = vpop.xlane.xlu0 %715
        %717 = vadd.xlane.f32.xlu0 %v702
        %v718 = vpop.xlane.xlu0 %717
        %719 = vadd.xlane.f32.xlu0 %v704
        %v720 = vpop.xlane.xlu0 %719
        %v721 = vrcp.pop %v706
        %v722 = vmul.f32 1.0, %v721
        %v723 = vrcp.pop %v708
        %v724 = vmul.f32 1.0, %v723
        %v725 = vrcp.pop %v710
        %v726 = vmul.f32 1.0, %v725
        %v727 = vrcp.pop %v712
        %v728 = vmul.f32 1.0, %v727
        %v729 = vrcp.pop %v714
        %v730 = vmul.f32 1.0, %v729
        %v731 = vrcp.pop %v716
        %v732 = vmul.f32 1.0, %v731
        %v733 = vrcp.pop %v718
        %v734 = vmul.f32 1.0, %v733
        %v735 = vrcp.pop %v720
        %v736 = vmul.f32 1.0, %v735
        %v737 = vmul.f32 %v690, %v722
        %v738 = vmul.f32 %v692, %v724
        %v739 = vmul.f32 %v694, %v726
        %v740 = vmul.f32 %v696, %v728
        %v741 = vmul.f32 %v698, %v730
        %v742 = vmul.f32 %v700, %v732
        %v743 = vmul.f32 %v702, %v734
        %v744 = vmul.f32 %v704, %v736
        %v745 = vpack.c.bf16 %v738, %v737
        %v746 = vpack.c.bf16 %v740, %v739
        %v747 = vpack.c.bf16 %v742, %v741
        %v748 = vpack.c.bf16 %v744, %v743
        %757 = vmatprep.subr.bf16.mxu0 0
        %758 = vmatpush1.bf16.msra.mxu0 %v339
        %759 = vmatprep.subr.bf16.mxu0 0
        %760 = vmatpush1.bf16.msra.mxu0 %v340
        %761 = vmatprep.subr.bf16.mxu0 0
        %762 = vmatpush1.bf16.msra.mxu0 %v341
        %763 = vmatprep.subr.bf16.mxu0 0
        %764 = vmatpush1.bf16.msra.mxu0 %v342
        %765 = vmatprep.subr.bf16.mxu0 0
        %766 = vmatpush1.bf16.msra.mxu0 %v343
        %767 = vmatprep.subr.bf16.mxu0 0
        %768 = vmatpush1.bf16.msra.mxu0 %v344
        %769 = vmatprep.subr.bf16.mxu0 0
        %770 = vmatpush1.bf16.msra.mxu0 %v345
        %771 = vmatprep.subr.bf16.mxu0 0
        %772 = vmatpush1.bf16.msra.mxu0 %v346
        %773 = vmatprep.subr.bf16.mxu0 0
        %774 = vmatpush1.bf16.msra.mxu0 0
        %775 = vmatprep.subr.bf16.mxu0 0
        %776 = vmatpush1.bf16.msra.mxu0 0
        %777 = vmatprep.subr.bf16.mxu0 0
        %778 = vmatpush1.bf16.msra.mxu0 0
        %779 = vmatprep.subr.bf16.mxu0 0
        %780 = vmatpush1.bf16.msra.mxu0 0
        %781 = vmatprep.subr.bf16.mxu0 0
        %782 = vmatpush1.bf16.msra.mxu0 0
        %783 = vmatprep.subr.bf16.mxu0 0
        %784 = vmatpush1.bf16.msra.mxu0 0
        %785 = vmatprep.subr.bf16.mxu0 0
        %786 = vmatpush1.bf16.msra.mxu0 0
        %787 = vmatprep.subr.bf16.mxu0 0
        %788 = vmatpush1.bf16.msra.mxu0 0
        %789 = vmatprep.mubr.bf16.mxu0 0
        %790 = vmatmul.mubr.bf16.gmra.mrb[0].mxu0 %v745
        %v791 = vpop.f32.mrb[0].mxu0
        %v792 = vadd.f32 0.0, %v791
        %v793 = vpop.f32.mrb[0].mxu0
        %v794 = vpop.f32.mrb[0].mxu0
        %v795 = vadd.f32 0.0, %v794
        %v796 = vpop.f32.mrb[0].mxu0
        %797 = vmatprep.mubr.bf16.mxu0 0
        %798 = vmatmul.mubr.bf16.gmra.mrb[0].mxu0 %v746
        %v799 = vpop.f32.mrb[0].mxu0
        %v800 = vadd.f32 0.0, %v799
        %v801 = vpop.f32.mrb[0].mxu0
        %v802 = vpop.f32.mrb[0].mxu0
        %v803 = vadd.f32 0.0, %v802
        %v804 = vpop.f32.mrb[0].mxu0
        %805 = vmatprep.mubr.bf16.mxu0 0
        %806 = vmatmul.mubr.bf16.gmra.mrb[0].mxu0 %v747
        %v807 = vpop.f32.mrb[0].mxu0
        %v808 = vadd.f32 0.0, %v807
        %v809 = vpop.f32.mrb[0].mxu0
        %v810 = vpop.f32.mrb[0].mxu0
        %v811 = vadd.f32 0.0, %v810
        %v812 = vpop.f32.mrb[0].mxu0
        %813 = vmatprep.mubr.bf16.mxu0 0
        %814 = vmatmul.mubr.bf16.gmra.mrb[0].mxu0 %v748
        %v815 = vpop.f32.mrb[0].mxu0
        %v816 = vadd.f32 0.0, %v815
        %v817 = vpop.f32.mrb[0].mxu0
        %v818 = vpop.f32.mrb[0].mxu0
        %v819 = vadd.f32 0.0, %v818
        %v820 = vpop.f32.mrb[0].mxu0
        %821 = vdwg.mxu0
        %822 = vst.msk [vmem:[%s259] sm:$0xff] %vm347, %v792
        %823 = vst.msk [vmem:[%s259 + $0x8] sm:$0xff] %vm347, %v795
        %824 = vst.msk [vmem:[%s259 + $0x10] sm:$0xff] %vm347, %v800
        %825 = vst.msk [vmem:[%s259 + $0x18] sm:$0xff] %vm347, %v803
        %826 = vst.msk [vmem:[%s259 + $0x20] sm:$0xff] %vm347, %v808
        %827 = vst.msk [vmem:[%s259 + $0x28] sm:$0xff] %vm347, %v811
        %828 = vst.msk [vmem:[%s259 + $0x30] sm:$0xff] %vm347, %v816
        %829 = vst.msk [vmem:[%s259 + $0x38] sm:$0xff] %vm347, %v819
        %s830 = smul.u32 8, %s20
        %p831 = scmp.lt.s32.totalorder %s830, 15
        %s832 = scalar_select %p831, %s830, 15
        %s833 = smul.addr %s832, 8
        %s834 = scalar_lea.vmem %s4, %s833
        %s835 = sand.u32 %s148, 1
        %s836 = scalar_lea.sflag [#allocation3], %s835
        %s837 = sand.u32 %s148, 1
        %s838 = smul.addr %s837, 8
        %s839 = scalar_lea.vmem [#allocation2], %s838
        // Predicated region
        $region37: #{tpu_custom_call.1} parent=35 // pred_check
          %p840 = pneg %p132
        $region38: #{tpu_custom_call.1} parent=35 // pred_check_branch
          %842 = sbr.rel (%p840) target = $region40
        $region39: #{tpu_custom_call.1} parent=35 // pred_region
          %s843 = smul.u32 8, %s20
        $region40: #{tpu_custom_call.1} parent=35 // pred_fallthru
          _
        // Predicated region
        $region41: #{tpu_custom_call.1} parent=35 // pred_check
          %p844 = pneg %p158
        $region42: #{tpu_custom_call.1} parent=35 // pred_check_branch
          %846 = sbr.rel (%p844) target = $region44
        $region43: #{tpu_custom_call.1} parent=35 // pred_region
          %s848 = ssub.s32 128, 128
          %849 = vsyncadd %s836, %s848
          %s850 = smul.addr %s20, 128
          %s851 = scalar_lea.hbm %s5, %s850
          %s853 = sshll.u32 %s839, 4
          %s854 = int_to_ptr.vmem [resolvable:$true] %s853
          %856 = dma.vmem_to_hbm [thread:$0]  %s854, 128, %s851, %s836
        $region44: #{tpu_custom_call.1} parent=35 // pred_fallthru
          _
      $region36: #{tpu_custom_call.1} parent=5 // pred_fallthru
        _
      %p857 = scmp.le.s32.totalorder 2, %s15
      // Predicated region
      $region45: #{tpu_custom_call.1} parent=5 // pred_check
        %p858 = pneg %p857
      $region46: #{tpu_custom_call.1} parent=5 // pred_check_branch
        %860 = sbr.rel (%p858) target = $region48
      $region47: #{tpu_custom_call.1} parent=5 // pred_region
        %s861 = ssub.s32 %s15, 2
        // Predicated region
        $region49: #{tpu_custom_call.1} parent=47 // pred_check
          %p862 = pneg %p138
        $region50: #{tpu_custom_call.1} parent=47 // pred_check_branch
          %864 = sbr.rel (%p862) target = $region52
        $region51: #{tpu_custom_call.1} parent=47 // pred_region
          %s865 = smul.u32 8, %s21
          %p866 = scmp.lt.s32.totalorder %s865, 15
          %s867 = scalar_select %p866, %s865, 15
          %s868 = smul.addr %s867, 8
          %s869 = scalar_lea.vmem %s4, %s868
        $region52: #{tpu_custom_call.1} parent=47 // pred_fallthru
          _
        // Predicated region
        $region53: #{tpu_custom_call.1} parent=47 // pred_check
          %p870 = pneg %p164
        $region54: #{tpu_custom_call.1} parent=47 // pred_check_branch
          %872 = sbr.rel (%p870) target = $region56
        $region55: #{tpu_custom_call.1} parent=47 // pred_region
          %s873 = sand.u32 %s149, 1
          %s874 = scalar_lea.sflag [#allocation3], %s873
          %s875 = sand.u32 %s149, 1
          %s876 = smul.addr %s875, 8
          %s877 = scalar_lea.vmem [#allocation2], %s876
          %878 = dma.done %s874, 128
        $region56: #{tpu_custom_call.1} parent=47 // pred_fallthru
          _
      $region48: #{tpu_custom_call.1} parent=5 // pred_fallthru
        _
    $region6: #{tpu_custom_call.1} parent=1 // loop_footer
      %s19 = sadd.s32 1, %s15
    $region7: #{tpu_custom_call.1} parent=1 // loop_footer_branch
      %14 = sbr.rel target = $region3
    $region8: #{tpu_custom_call.1} parent=1 // loop_exit
      _
    %879 = vsyncpa [#allocation3], 1
    %s880 = scalar_lea.sflag [#allocation3], 1
    %881 = vsyncpa %s880, 1

</llo_original>
